<compile_context>
chip_gen: v7x
topology: tpu7x:2x2x1
jax: 0.10.0
libtpu: 0.0.40
codegen_flags: <defaults>
</compile_context>

<pallas_src>
import functools

import jax
import jax.numpy as jnp
from jax import lax
from jax.experimental import pallas as pl
from jax.experimental.pallas import tpu as pltpu

D1 = 256   # common_net hidden 1
D2 = 128   # common_net hidden 2 (= head input width)
DH = 128   # fused head hidden (lanes [0:64]=value, [64:128]=advantage)
DO = 128   # lane-dense padded output width (must be >= n_actions + 1)


def _round_up(x, m):
    return -(-x // m) * m


def dueling_dqn_kernel(nvalid_ref, x_ref, w1_ref, wpack_ref, bias_ref,
                       out_ref, sums_ref, *, n_actions, tb):
    i = pl.program_id(0)
    x = x_ref[...]                                               # (TB, n_in_pad)

    # common_net: Linear -> ReLU -> Linear -> ReLU
    h1 = jnp.maximum(
        jnp.dot(x, w1_ref[...], preferred_element_type=jnp.float32)
        + bias_ref[0:1, :], 0.0)                                 # (TB, 256)
    h2 = jnp.maximum(
        jnp.dot(h1, wpack_ref[0:D1, :], preferred_element_type=jnp.float32)
        + bias_ref[1:2, 0:D2], 0.0)                              # (TB, 128)

    # fused heads, layer 1: lanes [0:64] = value hidden, [64:128] = adv hidden
    hh = jnp.maximum(
        jnp.dot(h2, wpack_ref[D1:D1 + D2, :],
                preferred_element_type=jnp.float32)
        + bias_ref[2:3, 0:DH], 0.0)                              # (TB, 128)

    # fused heads, layer 2: lanes [0:A] = adv, lane A = val, rest exactly 0
    head = jnp.maximum(
        jnp.dot(hh, wpack_ref[D1 + D2:D1 + D2 + DH, :],
                preferred_element_type=jnp.float32)
        + bias_ref[3:4, 0:DO], 0.0)                              # (TB, 128)

    val = head[:, n_actions:n_actions + 1]                       # (TB, 1)

    # Per-tile partial sum of adv over VALID rows and adv lanes only
    # (padded batch rows and lanes >= n_actions are masked out).
    rows = lax.broadcasted_iota(jnp.int32, head.shape, 0) + i * tb
    lanes = lax.broadcasted_iota(jnp.int32, head.shape, 1)
    mask = (rows < nvalid_ref[0]) & (lanes < n_actions)
    partial = jnp.sum(jnp.where(mask, head, 0.0))

    # val + adv on lanes < n_actions (rest is sliced off outside); the global
    # -mean correction is applied in the wrapper after the partial sums reduce.
    out_ref[...] = head + val

    # Stash the partial sum at [0, 0] of this tile's (8, 128) sums block.
    r8 = lax.broadcasted_iota(jnp.int32, (8, 128), 0)
    c8 = lax.broadcasted_iota(jnp.int32, (8, 128), 1)
    sums_ref[...] = jnp.where((r8 == 0) & (c8 == 0), partial, 0.0)


def pack_params(params, n_inputs, n_actions):
    """Pack the 12 Linear tensors into 3 blobs consumed by the kernel."""
    assert n_actions + 1 <= DO, "output padding assumes n_actions + 1 <= 128"
    n_in_pad = max(8, _round_up(n_inputs, 8))

    # blob 1: first-layer weight, rows zero-padded to a sublane multiple
    w1p = jnp.zeros((n_in_pad, D1), jnp.float32).at[:n_inputs, :].set(params["w1"])

    # blob 2: [W2 ; fused-head-1 ; fused-head-2] stacked on the sublane axis
    wpack = jnp.zeros((D1 + D2 + DH, DO), jnp.float32)
    wpack = wpack.at[0:D1, 0:D2].set(params["w2"])                    # (256,128)
    wpack = wpack.at[D1:D1 + D2, 0:64].set(params["wv1"])             # value h1
    wpack = wpack.at[D1:D1 + D2, 64:128].set(params["wa1"])           # adv   h1
    base = D1 + D2
    wpack = wpack.at[base:base + 64, n_actions].set(params["wv2"][:, 0])     # val
    wpack = wpack.at[base + 64:base + 128, 0:n_actions].set(params["wa2"])   # adv

    # blob 3: biases, one row per layer (8 sublanes x 256 lanes)
    bias = jnp.zeros((8, D1), jnp.float32)
    bias = bias.at[0, :].set(params["b1"][0])
    bias = bias.at[1, 0:D2].set(params["b2"][0])
    bias = bias.at[2, 0:64].set(params["bv1"][0])
    bias = bias.at[2, 64:128].set(params["ba1"][0])
    bias = bias.at[3, 0:n_actions].set(params["ba2"][0])
    bias = bias.at[3, n_actions].set(params["bv2"][0, 0])

    return dict(w1p=w1p, wpack=wpack, bias=bias,
                n_inputs=n_inputs, n_actions=n_actions)


def dueling_dqn_forward(state, packed, *, block_b=256):
    """state: (B, n_inputs) f32. packed: output of pack_params."""
    B, n_in = state.shape
    n_actions = packed["n_actions"]
    w1p, wpack, bias = packed["w1p"], packed["wpack"], packed["bias"]
    n_in_pad = w1p.shape[0]

    # Batch tile: up to block_b rows (256 targets the v6e/v7x MXU), clamped so
    # tiny act-time batches don't pay for a mostly-padded tile.
    tb = min(block_b, _round_up(max(B, 8), 8))
    grid = pl.cdiv(B, tb)
    b_pad = grid * tb

    x = state
    if n_in < n_in_pad:
        x = jnp.pad(x, ((0, 0), (0, n_in_pad - n_in)))
    if B < b_pad:
        x = jnp.pad(x, ((0, b_pad - B), (0, 0)))
    nvalid = jnp.array([B], jnp.int32)

    kernel = functools.partial(dueling_dqn_kernel, n_actions=n_actions, tb=tb)

    flops = 2 * b_pad * (n_in_pad * D1 + D1 * D2 + D2 * DH + DH * DO)
    bytes_accessed = 4 * (x.size + w1p.size + wpack.size + bias.size
                          + b_pad * DO + grid * 8 * 128)

    grid_spec = pltpu.PrefetchScalarGridSpec(
        num_scalar_prefetch=1,
        grid=(grid,),
        in_specs=[
            pl.BlockSpec((tb, n_in_pad), lambda i, n: (i, 0)),           # state
            pl.BlockSpec((n_in_pad, D1), lambda i, n: (0, 0)),           # w1p
            pl.BlockSpec((D1 + D2 + DH, DO), lambda i, n: (0, 0)),       # wpack
            pl.BlockSpec((8, D1), lambda i, n: (0, 0)),                  # bias
        ],
        out_specs=[
            pl.BlockSpec((tb, DO), lambda i, n: (i, 0)),                 # q pre-mean
            pl.BlockSpec((8, 128), lambda i, n: (i, 0)),                 # partial sums
        ],
    )

    out_pad, sums = pl.pallas_call(
        kernel,
        out_shape=(jax.ShapeDtypeStruct((b_pad, DO), jnp.float32),
                   jax.ShapeDtypeStruct((grid * 8, 128), jnp.float32)),
        grid_spec=grid_spec,
        compiler_params=pltpu.CompilerParams(
            dimension_semantics=("parallel",)),
        cost_estimate=pl.CostEstimate(flops=flops, transcendentals=0,
                                      bytes_accessed=bytes_accessed),
    )(nvalid, x, w1p, wpack, bias)

    # Exact PyTorch semantics: adv.mean() is a GLOBAL scalar over all B*A adv
    # elements. Tiny reduce over per-tile partial sums + broadcast subtract.
    mean = jnp.sum(sums) * (1.0 / (B * n_actions))
    return out_pad[:B, :n_actions] - mean


def init_params(key, n_inputs, n_actions):
    """PyTorch-style Linear init: U(-1/sqrt(fan_in), 1/sqrt(fan_in)).
    Weights stored pre-transposed as (in, out); biases as (1, out)."""
    def linear(key, fan_in, fan_out):
        kw, kb = jax.random.split(key)
        bound = 1.0 / jnp.sqrt(fan_in)
        w = jax.random.uniform(kw, (fan_in, fan_out), jnp.float32, -bound, bound)
        b = jax.random.uniform(kb, (1, fan_out), jnp.float32, -bound, bound)
        return w, b

    keys = jax.random.split(key, 6)
    w1, b1 = linear(keys[0], n_inputs, D1)
    w2, b2 = linear(keys[1], D1, D2)
    wv1, bv1 = linear(keys[2], D2, 64)
    wv2, bv2 = linear(keys[3], 64, 1)
    wa1, ba1 = linear(keys[4], D2, 64)
    wa2, ba2 = linear(keys[5], 64, n_actions)
    return dict(w1=w1, b1=b1, w2=w2, b2=b2,
                wv1=wv1, bv1=bv1, wv2=wv2, bv2=bv2,
                wa1=wa1, ba1=ba1, wa2=wa2, ba2=ba2)


if __name__ == "__main__":
    key = jax.random.PRNGKey(0)
    k_params, k_state = jax.random.split(key)

    # Small, CartPole-like environment: 8-dim observation, 4 discrete actions.
    B, n_inputs, n_actions = 8, 8, 4
    params = init_params(k_params, n_inputs, n_actions)
    packed = pack_params(params, n_inputs, n_actions)
    state = jax.random.normal(k_state, (B, n_inputs), jnp.float32)

    # Pure-JAX reference on the ORIGINAL (unpacked) params validates the
    # forward math, the weight packing / head fusion, and the global adv.mean().
    def ref(x, p):
        h = jnp.maximum(x @ p["w1"] + p["b1"], 0.0)
        h = jnp.maximum(h @ p["w2"] + p["b2"], 0.0)
        v = jnp.maximum(h @ p["wv1"] + p["bv1"], 0.0)
        v = jnp.maximum(v @ p["wv2"] + p["bv2"], 0.0)
        a = jnp.maximum(h @ p["wa1"] + p["ba1"], 0.0)
        a = jnp.maximum(a @ p["wa2"] + p["ba2"], 0.0)
        return v + a - jnp.mean(a)

    # Case 1: single tile (act-time batch).
    out = dueling_dqn_forward(state, packed)
    jax.block_until_ready(out)
    expected = ref(state, params)
    assert out.shape == (B, n_actions)
    assert jnp.allclose(out, expected, atol=2e-5, rtol=2e-5), (
        float(jnp.max(jnp.abs(out - expected))))

    # Case 2: multi-tile grid with row-masked padding (B not a tile multiple).
    B2 = 40
    state2 = jax.random.normal(jax.random.PRNGKey(1), (B2, n_inputs), jnp.float32)
    out2 = dueling_dqn_forward(state2, packed, block_b=16)
    jax.block_until_ready(out2)
    expected2 = ref(state2, params)
    assert out2.shape == (B2, n_actions)
    assert jnp.allclose(out2, expected2, atol=2e-5, rtol=2e-5), (
        float(jnp.max(jnp.abs(out2 - expected2))))

    print("KERNEL_OK")
</pallas_src>

<mosaic_0001>
module attributes {stable_mosaic.version = 11 : i64} {
  func.func @dueling_dqn_kernel(%arg0: i32, %arg1: memref<1xi32, #tpu.memory_space<smem>>, %arg2: memref<8x8xf32, #tpu.memory_space<vmem>>, %arg3: memref<8x256xf32, #tpu.memory_space<vmem>>, %arg4: memref<512x128xf32, #tpu.memory_space<vmem>>, %arg5: memref<8x256xf32, #tpu.memory_space<vmem>>, %arg6: memref<8x128xf32, #tpu.memory_space<vmem>>, %arg7: memref<8x128xf32, #tpu.memory_space<vmem>>) attributes {dimension_semantics = [#tpu.dimension_semantics<parallel>], iteration_bounds = array<i64: 1>, scalar_prefetch = 1 : i64, scratch_operands = 0 : i64, tpu.core_type = #tpu.core_type<tc>, window_params = [{transform_indices = @transform_0, window_bounds = array<i64: 8, 8>}, {pipeline_mode = #tpu.pipeline_mode<synchronous>, transform_indices = @transform_1, window_bounds = array<i64: 8, 256>}, {pipeline_mode = #tpu.pipeline_mode<synchronous>, transform_indices = @transform_2, window_bounds = array<i64: 512, 128>}, {pipeline_mode = #tpu.pipeline_mode<synchronous>, transform_indices = @transform_3, window_bounds = array<i64: 8, 256>}, {transform_indices = @transform_4, window_bounds = array<i64: 8, 128>}, {transform_indices = @transform_5, window_bounds = array<i64: 8, 128>}]} {
    %c0 = arith.constant 0 : index
    %c0_0 = arith.constant 0 : index
    %0 = vector.load %arg2[%c0, %c0_0] : memref<8x8xf32, #tpu.memory_space<vmem>>, vector<8x8xf32>
    %c0_1 = arith.constant 0 : index
    %c0_2 = arith.constant 0 : index
    %1 = vector.load %arg3[%c0_1, %c0_2] : memref<8x256xf32, #tpu.memory_space<vmem>>, vector<8x256xf32>
    %cst = arith.constant dense<0.000000e+00> : vector<8x256xf32>
    %2 = tpu.matmul %0, %1, %cst {dimension_numbers = #tpu.dot_dimension_numbers<[1], [0], [0], [1], [0, 0, 1, 1], [], []>} : vector<8x8xf32>, vector<8x256xf32>, vector<8x256xf32> -> vector<8x256xf32>
    %c0_3 = arith.constant 0 : index
    %c0_4 = arith.constant 0 : index
    %3 = vector.load %arg5[%c0_3, %c0_4] : memref<8x256xf32, #tpu.memory_space<vmem>>, vector<1x256xf32>
    %4 = vector.broadcast %3 : vector<1x256xf32> to vector<8x256xf32>
    %5 = arith.addf %2, %4 : vector<8x256xf32>
    %cst_5 = arith.constant 0.000000e+00 : f32
    %6 = vector.broadcast %cst_5 : f32 to vector<8x256xf32>
    %7 = arith.maximumf %5, %6 : vector<8x256xf32>
    %c0_6 = arith.constant 0 : index
    %c0_7 = arith.constant 0 : index
    %8 = vector.load %arg4[%c0_6, %c0_7] : memref<512x128xf32, #tpu.memory_space<vmem>>, vector<256x128xf32>
    %cst_8 = arith.constant dense<0.000000e+00> : vector<8x128xf32>
    %9 = tpu.matmul %7, %8, %cst_8 {dimension_numbers = #tpu.dot_dimension_numbers<[1], [0], [0], [1], [0, 0, 1, 1], [], []>} : vector<8x256xf32>, vector<256x128xf32>, vector<8x128xf32> -> vector<8x128xf32>
    %c1 = arith.constant 1 : index
    %c0_9 = arith.constant 0 : index
    %10 = vector.load %arg5[%c1, %c0_9] : memref<8x256xf32, #tpu.memory_space<vmem>>, vector<1x128xf32>
    %11 = vector.broadcast %10 : vector<1x128xf32> to vector<8x128xf32>
    %12 = arith.addf %9, %11 : vector<8x128xf32>
    %cst_10 = arith.constant 0.000000e+00 : f32
    %13 = vector.broadcast %cst_10 : f32 to vector<8x128xf32>
    %14 = arith.maximumf %12, %13 : vector<8x128xf32>
    %c256 = arith.constant 256 : index
    %c0_11 = arith.constant 0 : index
    %15 = vector.load %arg4[%c256, %c0_11] : memref<512x128xf32, #tpu.memory_space<vmem>>, vector<128x128xf32>
    %cst_12 = arith.constant dense<0.000000e+00> : vector<8x128xf32>
    %16 = tpu.matmul %14, %15, %cst_12 {dimension_numbers = #tpu.dot_dimension_numbers<[1], [0], [0], [1], [0, 0, 1, 1], [], []>} : vector<8x128xf32>, vector<128x128xf32>, vector<8x128xf32> -> vector<8x128xf32>
    %c2 = arith.constant 2 : index
    %c0_13 = arith.constant 0 : index
    %17 = vector.load %arg5[%c2, %c0_13] : memref<8x256xf32, #tpu.memory_space<vmem>>, vector<1x128xf32>
    %18 = vector.broadcast %17 : vector<1x128xf32> to vector<8x128xf32>
    %19 = arith.addf %16, %18 : vector<8x128xf32>
    %cst_14 = arith.constant 0.000000e+00 : f32
    %20 = vector.broadcast %cst_14 : f32 to vector<8x128xf32>
    %21 = arith.maximumf %19, %20 : vector<8x128xf32>
    %c384 = arith.constant 384 : index
    %c0_15 = arith.constant 0 : index
    %22 = vector.load %arg4[%c384, %c0_15] : memref<512x128xf32, #tpu.memory_space<vmem>>, vector<128x128xf32>
    %cst_16 = arith.constant dense<0.000000e+00> : vector<8x128xf32>
    %23 = tpu.matmul %21, %22, %cst_16 {dimension_numbers = #tpu.dot_dimension_numbers<[1], [0], [0], [1], [0, 0, 1, 1], [], []>} : vector<8x128xf32>, vector<128x128xf32>, vector<8x128xf32> -> vector<8x128xf32>
    %c3 = arith.constant 3 : index
    %c0_17 = arith.constant 0 : index
    %24 = vector.load %arg5[%c3, %c0_17] : memref<8x256xf32, #tpu.memory_space<vmem>>, vector<1x128xf32>
    %25 = vector.broadcast %24 : vector<1x128xf32> to vector<8x128xf32>
    %26 = arith.addf %23, %25 : vector<8x128xf32>
    %cst_18 = arith.constant 0.000000e+00 : f32
    %27 = vector.broadcast %cst_18 : f32 to vector<8x128xf32>
    %28 = arith.maximumf %26, %27 : vector<8x128xf32>
    %29 = vector.extract_strided_slice %28 {offsets = [0, 4], sizes = [8, 1], strides = [1, 1]} : vector<8x128xf32> to vector<8x1xf32>
    %30 = tpu.iota {dimensions = array<i32: 0>} : vector<8x128xi32>
    %c8_i32 = arith.constant 8 : i32
    %31 = arith.muli %arg0, %c8_i32 : i32
    %32 = vector.broadcast %31 : i32 to vector<8x128xi32>
    %33 = arith.addi %30, %32 : vector<8x128xi32>
    %34 = tpu.iota {dimensions = array<i32: 1>} : vector<8x128xi32>
    %c0_19 = arith.constant 0 : index
    %35 = memref.load %arg1[%c0_19] : memref<1xi32, #tpu.memory_space<smem>>
    %36 = vector.broadcast %35 : i32 to vector<8x128xi32>
    %37 = arith.cmpi slt, %33, %36 : vector<8x128xi32>
    %c4_i32 = arith.constant 4 : i32
    %38 = vector.broadcast %c4_i32 : i32 to vector<8x128xi32>
    %39 = arith.cmpi slt, %34, %38 : vector<8x128xi32>
    %40 = arith.andi %37, %39 : vector<8x128xi1>
    %cst_20 = arith.constant 0.000000e+00 : f32
    %41 = vector.broadcast %cst_20 : f32 to vector<8x128xf32>
    %42 = arith.select %40, %28, %41 : vector<8x128xi1>, vector<8x128xf32>
    %43 = vector.shape_cast %42 : vector<8x128xf32> to vector<1x8x128xf32>
    %cst_21 = arith.constant dense<0.000000e+00> : vector<1xf32>
    %44 = vector.multi_reduction <add>, %43, %cst_21 [1, 2] : vector<1x8x128xf32> to vector<1xf32>
    %45 = vector.shape_cast %44 : vector<1xf32> to vector<1x1x1xf32>
    %46 = vector.extract %45[0, 0, 0] : f32 from vector<1x1x1xf32>
    %47 = vector.broadcast %29 : vector<8x1xf32> to vector<8x128xf32>
    %48 = arith.addf %28, %47 : vector<8x128xf32>
    %c0_22 = arith.constant 0 : index
    %c0_23 = arith.constant 0 : index
    %49 = vector.load %arg6[%c0_22, %c0_23] : memref<8x128xf32, #tpu.memory_space<vmem>>, vector<8x128xf32>
    tpu.vector_store %arg6[%c0_22, %c0_23], %48 {strides = array<i32>} : memref<8x128xf32, #tpu.memory_space<vmem>>, vector<8x128xf32>,
    %50 = tpu.iota {dimensions = array<i32: 0>} : vector<8x128xi32>
    %51 = tpu.iota {dimensions = array<i32: 1>} : vector<8x128xi32>
    %c0_i32 = arith.constant 0 : i32
    %52 = vector.broadcast %c0_i32 : i32 to vector<8x128xi32>
    %53 = arith.cmpi eq, %50, %52 : vector<8x128xi32>
    %c0_i32_24 = arith.constant 0 : i32
    %54 = vector.broadcast %c0_i32_24 : i32 to vector<8x128xi32>
    %55 = arith.cmpi eq, %51, %54 : vector<8x128xi32>
    %56 = arith.andi %53, %55 : vector<8x128xi1>
    %cst_25 = arith.constant 0.000000e+00 : f32
    %57 = vector.broadcast %46 : f32 to vector<8x128xf32>
    %58 = vector.broadcast %cst_25 : f32 to vector<8x128xf32>
    %59 = arith.select %56, %57, %58 : vector<8x128xi1>, vector<8x128xf32>
    %c0_26 = arith.constant 0 : index
    %c0_27 = arith.constant 0 : index
    %60 = vector.load %arg7[%c0_26, %c0_27] : memref<8x128xf32, #tpu.memory_space<vmem>>, vector<8x128xf32>
    tpu.vector_store %arg7[%c0_26, %c0_27], %59 {strides = array<i32>} : memref<8x128xf32, #tpu.memory_space<vmem>>, vector<8x128xf32>,
    return
  }
  func.func @transform_0(%arg0: i32, %arg1: memref<1xi32, #tpu.memory_space<smem>>) -> (i32, i32) {
    %c0_i32 = arith.constant 0 : i32
    %c0_i32_0 = arith.constant 0 : i32
    return %arg0, %c0_i32 : i32, i32
  }
  func.func @transform_1(%arg0: i32, %arg1: memref<1xi32, #tpu.memory_space<smem>>) -> (i32, i32) {
    %c0_i32 = arith.constant 0 : i32
    %c0_i32_0 = arith.constant 0 : i32
    %c0_i32_1 = arith.constant 0 : i32
    return %c0_i32, %c0_i32_0 : i32, i32
  }
  func.func @transform_2(%arg0: i32, %arg1: memref<1xi32, #tpu.memory_space<smem>>) -> (i32, i32) {
    %c0_i32 = arith.constant 0 : i32
    %c0_i32_0 = arith.constant 0 : i32
    %c0_i32_1 = arith.constant 0 : i32
    return %c0_i32, %c0_i32_0 : i32, i32
  }
  func.func @transform_3(%arg0: i32, %arg1: memref<1xi32, #tpu.memory_space<smem>>) -> (i32, i32) {
    %c0_i32 = arith.constant 0 : i32
    %c0_i32_0 = arith.constant 0 : i32
    %c0_i32_1 = arith.constant 0 : i32
    return %c0_i32, %c0_i32_0 : i32, i32
  }
  func.func @transform_4(%arg0: i32, %arg1: memref<1xi32, #tpu.memory_space<smem>>) -> (i32, i32) {
    %c0_i32 = arith.constant 0 : i32
    %c0_i32_0 = arith.constant 0 : i32
    return %arg0, %c0_i32 : i32, i32
  }
  func.func @transform_5(%arg0: i32, %arg1: memref<1xi32, #tpu.memory_space<smem>>) -> (i32, i32) {
    %c0_i32 = arith.constant 0 : i32
    %c0_i32_0 = arith.constant 0 : i32
    return %arg0, %c0_i32 : i32, i32
  }
}

</mosaic_0001>

<llo_original>
// kernel: tpu_custom_call.1
$region0: #{tpu_custom_call.1}
  #allocation0 [shape = 'u32[]', space=smem, size = 0x4, offset = 0x4, fixed_abs, tag = 'smem constant byte address 0x4 - core index']
  #allocation1 [shape = 'u32[144,128]{1,0:T(1,128)}', space=vmem, size = 0x12000, scoped, tag = 'internal scratch']
  #allocation2 [shape = 's32[1]{0}', space=sflag, size = 0x4, scoped, tag = 'scoped memory for tpu_custom_call.1']
  #allocation3 [shape = 's32[1]{0:T(128)S(6)}', space=smem, size = 0x200, scoped, tag = 'prefetched SMEM operand 0']
  %s0 = inlined_call_operand.<no memory space> [shape: s32[1], index: 0, kind: input, shape index: {}]
  %s1 = inlined_call_operand.hbm [shape: f32[8,8], index: 1, kind: input, shape index: {}]
  %s2 = inlined_call_operand.hbm [shape: f32[8,256], index: 2, kind: input, shape index: {}]
  %s3 = inlined_call_operand.hbm [shape: f32[512,128], index: 3, kind: input, shape index: {}]
  %s4 = inlined_call_operand.hbm [shape: f32[8,256], index: 4, kind: input, shape index: {}]
  %s5 = inlined_call_operand.hbm [shape: f32[8,128], index: 5, kind: output, shape index: {0}]
  %s6 = inlined_call_operand.hbm [shape: f32[8,128], index: 6, kind: output, shape index: {1}]
  %7 = xla_tuple %s5, %s6
  %s8 = sld [smem:[#allocation0]]
  $region50: #{tpu_custom_call.1} parent=0
    _
  %s10 = ssub.s32 1, %s8
  %s11 = scalar_select 0, %s10, %s8
  %12 = sst [smem:[#allocation3]] %s0
  $region1: #{tpu_custom_call.1} parent=0
    #allocation4 [shape = 'u8[4096]{0}', space=vmem, size = 0x1000, scoped, tag = 'input window, operand 1, single buffered']
    #allocation5 [shape = 's32[1]{0}', space=sflag, size = 0x4, scoped, tag = 'scoped memory for tpu_custom_call.1']
    #allocation6 [shape = 's32[1]{0}', space=sflag, size = 0x4, scoped, tag = 'scoped memory for tpu_custom_call.1']
    #allocation7 [shape = 'u8[8192]{0}', space=vmem, size = 0x2000, scoped, tag = 'input window, operand 2, single buffered']
    #allocation8 [shape = 's32[1]{0}', space=sflag, size = 0x4, scoped, tag = 'scoped memory for tpu_custom_call.1']
    #allocation9 [shape = 'u8[262144]{0}', space=vmem, size = 0x40000, scoped, tag = 'input window, operand 3, single buffered']
    #allocation10 [shape = 'u8[8192]{0}', space=vmem, size = 0x2000, scoped, tag = 'input window, operand 4, single buffered']
    #allocation11 [shape = 's32[1]{0}', space=sflag, size = 0x4, scoped, tag = 'scoped memory for tpu_custom_call.1']
    #allocation12 [shape = 'u8[4096]{0}', space=vmem, size = 0x1000, scoped, tag = 'output window, operand 0, single buffered']
    #allocation13 [shape = 'u8[4096]{0}', space=vmem, size = 0x1000, scoped, tag = 'output window, operand 1, single buffered']
    #allocation14 [shape = 's32[1]{0}', space=sflag, size = 0x4, scoped, tag = 'scoped memory for tpu_custom_call.1']
    %13 = vsyncpa [#allocation5], 0
    %14 = vsyncpa [#allocation8], 0
    %15 = vsyncpa [#allocation11], 0
    %16 = vsyncpa [#allocation6], 0
    %17 = vsyncpa [#allocation14], 0
    // Predicated region
    $region2: #{tpu_custom_call.1} parent=1 // pred_check
      _
    $region3: #{tpu_custom_call.1} parent=1 // pred_check_branch
      %19 = sbr.rel (0) target = $region5
    $region4: #{tpu_custom_call.1} parent=1 // pred_region
      %s21 = ssub.s32 128, 128
      %22 = vsyncadd [#allocation5], %s21
      %s24 = sshll.u32 [#allocation4], 4
      %s25 = int_to_ptr.vmem [resolvable:$true] %s24
      %27 = dma.hbm_to_vmem [thread:$0]  %s1, 128, %s25, [#allocation5]
    $region5: #{tpu_custom_call.1} parent=1 // pred_fallthru
      _
    // Predicated region
    $region6: #{tpu_custom_call.1} parent=1 // pred_check
      _
    $region7: #{tpu_custom_call.1} parent=1 // pred_check_branch
      %29 = sbr.rel (0) target = $region9
    $region8: #{tpu_custom_call.1} parent=1 // pred_region
      %s31 = ssub.s32 256, 256
      %32 = vsyncadd [#allocation8], %s31
      %s34 = sshll.u32 [#allocation7], 4
      %s35 = int_to_ptr.vmem [resolvable:$true] %s34
      %37 = dma.hbm_to_vmem [thread:$0]  %s2, 256, %s35, [#allocation8]
    $region9: #{tpu_custom_call.1} parent=1 // pred_fallthru
      _
    // Predicated region
    $region10: #{tpu_custom_call.1} parent=1 // pred_check
      _
    $region11: #{tpu_custom_call.1} parent=1 // pred_check_branch
      %39 = sbr.rel (0) target = $region13
    $region12: #{tpu_custom_call.1} parent=1 // pred_region
      %s41 = ssub.s32 8192, 8192
      %42 = vsyncadd [#allocation8], %s41
      %s43 = sshll.u32 [#allocation9], 4
      %s44 = int_to_ptr.vmem [resolvable:$true] %s43
      %49 = dma.hbm_to_vmem [thread:$0]  %s3, 8192, %s44, [#allocation8], 128, 128, 8
    $region13: #{tpu_custom_call.1} parent=1 // pred_fallthru
      _
    // Predicated region
    $region14: #{tpu_custom_call.1} parent=1 // pred_check
      _
    $region15: #{tpu_custom_call.1} parent=1 // pred_check_branch
      %51 = sbr.rel (0) target = $region17
    $region16: #{tpu_custom_call.1} parent=1 // pred_region
      %s53 = ssub.s32 256, 256
      %54 = vsyncadd [#allocation11], %s53
      %s56 = sshll.u32 [#allocation10], 4
      %s57 = int_to_ptr.vmem [resolvable:$true] %s56
      %59 = dma.hbm_to_vmem [thread:$0]  %s4, 256, %s57, [#allocation11]
    $region17: #{tpu_custom_call.1} parent=1 // pred_fallthru
      _
    // Predicated region
    $region18: #{tpu_custom_call.1} parent=1 // pred_check
      _
    $region19: #{tpu_custom_call.1} parent=1 // pred_check_branch
      %61 = sbr.rel (0) target = $region21
    $region20: #{tpu_custom_call.1} parent=1 // pred_region
      %62 = dma.done [#allocation5], 128
    $region21: #{tpu_custom_call.1} parent=1 // pred_fallthru
      _
    // Predicated region
    $region22: #{tpu_custom_call.1} parent=1 // pred_check
      _
    $region23: #{tpu_custom_call.1} parent=1 // pred_check_branch
      %64 = sbr.rel (0) target = $region25
    $region24: #{tpu_custom_call.1} parent=1 // pred_region
      %65 = dma.done [#allocation8], 256
    $region25: #{tpu_custom_call.1} parent=1 // pred_fallthru
      _
    // Predicated region
    $region26: #{tpu_custom_call.1} parent=1 // pred_check
      _
    $region27: #{tpu_custom_call.1} parent=1 // pred_check_branch
      %67 = sbr.rel (0) target = $region29
    $region28: #{tpu_custom_call.1} parent=1 // pred_region
      %68 = dma.done [#allocation8], 8192
    $region29: #{tpu_custom_call.1} parent=1 // pred_fallthru
      _
    // Predicated region
    $region30: #{tpu_custom_call.1} parent=1 // pred_check
      _
    $region31: #{tpu_custom_call.1} parent=1 // pred_check_branch
      %70 = sbr.rel (0) target = $region33
    $region32: #{tpu_custom_call.1} parent=1 // pred_region
      %71 = dma.done [#allocation11], 256
    $region33: #{tpu_custom_call.1} parent=1 // pred_fallthru
      _
    %v72 = vld [vmem:[#allocation4] sm:$0xff]
    %v73 = vld [vmem:[#allocation7] sm:$0xff]
    %v74 = vld [vmem:[#allocation7 + $0x8] sm:$0xff]
    %v75 = vld [vmem:[#allocation10] ss:$8 sm:$0x3]
    %v77 = vlaneseq
    %v78 = vshrl.u32 %v77, 7
    %v79 = vsub.s32 0, %v78
    %v80 = vrot.slane %v75, %v79
    %v81 = vlaneseq
    %v82 = vshrl.u32 %v81, 7
    %v83 = vsub.s32 1, %v82
    %v84 = vrot.slane %v75, %v83
    %vm87 = vcmask 64512
    %v89 = vsel %vm87, %v72, 0
    %91 = vmatprep.subr.mxu0 %v74
    %92 = vmatpush1.msra.mxu0 %v73
    %93 = vmatprep.subr.mxu0 0.0
    %94 = vmatpush1.msra.mxu0 0.0
    %95 = vmatprep.subr.mxu0 0.0
    %96 = vmatpush1.msra.mxu0 0.0
    %97 = vmatprep.subr.mxu0 0.0
    %98 = vmatpush1.msra.mxu0 0.0
    %99 = vmatprep.subr.mxu0 0.0
    %100 = vmatpush1.msra.mxu0 0.0
    %101 = vmatprep.subr.mxu0 0.0
    %102 = vmatpush1.msra.mxu0 0.0
    %103 = vmatprep.subr.mxu0 0.0
    %104 = vmatpush1.msra.mxu0 0.0
    %105 = vmatprep.subr.mxu0 0.0
    %106 = vmatpush1.msra.mxu0 0.0
    %107 = vmatprep.subr.mxu0 0.0
    %108 = vmatpush1.msra.mxu0 0.0
    %109 = vmatprep.subr.mxu0 0.0
    %110 = vmatpush1.msra.mxu0 0.0
    %111 = vmatprep.subr.mxu0 0.0
    %112 = vmatpush1.msra.mxu0 0.0
    %113 = vmatprep.subr.mxu0 0.0
    %114 = vmatpush1.msra.mxu0 0.0
    %115 = vmatprep.subr.mxu0 0.0
    %116 = vmatpush1.msra.mxu0 0.0
    %117 = vmatprep.subr.mxu0 0.0
    %118 = vmatpush1.msra.mxu0 0.0
    %119 = vmatprep.subr.mxu0 0.0
    %120 = vmatpush1.msra.mxu0 0.0
    %121 = vmatprep.subr.mxu0 0.0
    %122 = vmatpush1.msra.mxu0 0.0
    %123 = vmatprep.subr.mxu0 0.0
    %124 = vmatpush1.msra.mxu0 0.0
    %125 = vmatprep.subr.mxu0 0.0
    %126 = vmatpush1.msra.mxu0 0.0
    %127 = vmatprep.subr.mxu0 0.0
    %128 = vmatpush1.msra.mxu0 0.0
    %129 = vmatprep.subr.mxu0 0.0
    %130 = vmatpush1.msra.mxu0 0.0
    %131 = vmatprep.subr.mxu0 0.0
    %132 = vmatpush1.msra.mxu0 0.0
    %133 = vmatprep.subr.mxu0 0.0
    %134 = vmatpush1.msra.mxu0 0.0
    %135 = vmatprep.subr.mxu0 0.0
    %136 = vmatpush1.msra.mxu0 0.0
    %137 = vmatprep.subr.mxu0 0.0
    %138 = vmatpush1.msra.mxu0 0.0
    %139 = vmatprep.subr.mxu0 0.0
    %140 = vmatpush1.msra.mxu0 0.0
    %141 = vmatprep.subr.mxu0 0.0
    %142 = vmatpush1.msra.mxu0 0.0
    %143 = vmatprep.subr.mxu0 0.0
    %144 = vmatpush1.msra.mxu0 0.0
    %145 = vmatprep.subr.mxu0 0.0
    %146 = vmatpush1.msra.mxu0 0.0
    %147 = vmatprep.subr.mxu0 0.0
    %148 = vmatpush1.msra.mxu0 0.0
    %149 = vmatprep.subr.mxu0 0.0
    %150 = vmatpush1.msra.mxu0 0.0
    %151 = vmatprep.subr.mxu0 0.0
    %152 = vmatpush1.msra.mxu0 0.0
    %153 = vmatprep.subr.mxu0 0.0
    %154 = vmatpush1.msra.mxu0 0.0
    %155 = vmatprep.mubr.f32.mxu0 0.0
    %156 = vmatmul.mubr.f32.gmra.mrb[0].mxu0 %v89
    %v157 = vpop.f32.mrb[0].mxu0
    %v158 = vadd.f32 %v80, %v157
    %v159 = vpop.f32.mrb[0].mxu0
    %v160 = vadd.f32 %v84, %v159
    %161 = vdwg.mxu0
    %v162 = vmax.f32 %v158, 0.0
    %v163 = vmax.f32 %v160, 0.0
    %v164 = vld [vmem:[#allocation9] sm:$0xff]
    %v165 = vld [vmem:[#allocation9 + $0x8] sm:$0xff]
    %v166 = vld [vmem:[#allocation9 + $0x10] sm:$0xff]
    %v167 = vld [vmem:[#allocation9 + $0x18] sm:$0xff]
    %v168 = vld [vmem:[#allocation9 + $0x20] sm:$0xff]
    %v169 = vld [vmem:[#allocation9 + $0x28] sm:$0xff]
    %v170 = vld [vmem:[#allocation9 + $0x30] sm:$0xff]
    %v171 = vld [vmem:[#allocation9 + $0x38] sm:$0xff]
    %v172 = vld [vmem:[#allocation9 + $0x40] sm:$0xff]
    %v173 = vld [vmem:[#allocation9 + $0x48] sm:$0xff]
    %v174 = vld [vmem:[#allocation9 + $0x50] sm:$0xff]
    %v175 = vld [vmem:[#allocation9 + $0x58] sm:$0xff]
    %v176 = vld [vmem:[#allocation9 + $0x60] sm:$0xff]
    %v177 = vld [vmem:[#allocation9 + $0x68] sm:$0xff]
    %v178 = vld [vmem:[#allocation9 + $0x70] sm:$0xff]
    %v179 = vld [vmem:[#allocation9 + $0x78] sm:$0xff]
    %v180 = vld [vmem:[#allocation9 + $0x80] sm:$0xff]
    %v181 = vld [vmem:[#allocation9 + $0x88] sm:$0xff]
    %v182 = vld [vmem:[#allocation9 + $0x90] sm:$0xff]
    %v183 = vld [vmem:[#allocation9 + $0x98] sm:$0xff]
    %v184 = vld [vmem:[#allocation9 + $0xa0] sm:$0xff]
    %v185 = vld [vmem:[#allocation9 + $0xa8] sm:$0xff]
    %v186 = vld [vmem:[#allocation9 + $0xb0] sm:$0xff]
    %v187 = vld [vmem:[#allocation9 + $0xb8] sm:$0xff]
    %v188 = vld [vmem:[#allocation9 + $0xc0] sm:$0xff]
    %v189 = vld [vmem:[#allocation9 + $0xc8] sm:$0xff]
    %v190 = vld [vmem:[#allocation9 + $0xd0] sm:$0xff]
    %v191 = vld [vmem:[#allocation9 + $0xd8] sm:$0xff]
    %v192 = vld [vmem:[#allocation9 + $0xe0] sm:$0xff]
    %v193 = vld [vmem:[#allocation9 + $0xe8] sm:$0xff]
    %v194 = vld [vmem:[#allocation9 + $0xf0] sm:$0xff]
    %v195 = vld [vmem:[#allocation9 + $0xf8] sm:$0xff]
    %v196 = vld [vmem:[#allocation10 + $0x1] ss:$0 sm:$0xff]
    %197 = vmatprep.subr.mxu0 0.0
    %198 = vmatpush1.msra.mxu0 %v164
    %199 = vmatprep.subr.mxu0 0.0
    %200 = vmatpush1.msra.mxu0 %v165
    %201 = vmatprep.subr.mxu0 0.0
    %202 = vmatpush1.msra.mxu0 %v166
    %203 = vmatprep.subr.mxu0 0.0
    %204 = vmatpush1.msra.mxu0 %v167
    %205 = vmatprep.subr.mxu0 0.0
    %206 = vmatpush1.msra.mxu0 %v168
    %207 = vmatprep.subr.mxu0 0.0
    %208 = vmatpush1.msra.mxu0 %v169
    %209 = vmatprep.subr.mxu0 0.0
    %210 = vmatpush1.msra.mxu0 %v170
    %211 = vmatprep.subr.mxu0 0.0
    %212 = vmatpush1.msra.mxu0 %v171
    %213 = vmatprep.subr.mxu0 0.0
    %214 = vmatpush1.msra.mxu0 %v172
    %215 = vmatprep.subr.mxu0 0.0
    %216 = vmatpush1.msra.mxu0 %v173
    %217 = vmatprep.subr.mxu0 0.0
    %218 = vmatpush1.msra.mxu0 %v174
    %219 = vmatprep.subr.mxu0 0.0
    %220 = vmatpush1.msra.mxu0 %v175
    %221 = vmatprep.subr.mxu0 0.0
    %222 = vmatpush1.msra.mxu0 %v176
    %223 = vmatprep.subr.mxu0 0.0
    %224 = vmatpush1.msra.mxu0 %v177
    %225 = vmatprep.subr.mxu0 0.0
    %226 = vmatpush1.msra.mxu0 %v178
    %227 = vmatprep.subr.mxu0 0.0
    %228 = vmatpush1.msra.mxu0 %v179
    %229 = vmatprep.subr.mxu0 0.0
    %230 = vmatpush1.msra.mxu0 %v180
    %231 = vmatprep.subr.mxu0 0.0
    %232 = vmatpush1.msra.mxu0 %v181
    %233 = vmatprep.subr.mxu0 0.0
    %234 = vmatpush1.msra.mxu0 %v182
    %235 = vmatprep.subr.mxu0 0.0
    %236 = vmatpush1.msra.mxu0 %v183
    %237 = vmatprep.subr.mxu0 0.0
    %238 = vmatpush1.msra.mxu0 %v184
    %239 = vmatprep.subr.mxu0 0.0
    %240 = vmatpush1.msra.mxu0 %v185
    %241 = vmatprep.subr.mxu0 0.0
    %242 = vmatpush1.msra.mxu0 %v186
    %243 = vmatprep.subr.mxu0 0.0
    %244 = vmatpush1.msra.mxu0 %v187
    %245 = vmatprep.subr.mxu0 0.0
    %246 = vmatpush1.msra.mxu0 %v188
    %247 = vmatprep.subr.mxu0 0.0
    %248 = vmatpush1.msra.mxu0 %v189
    %249 = vmatprep.subr.mxu0 0.0
    %250 = vmatpush1.msra.mxu0 %v190
    %251 = vmatprep.subr.mxu0 0.0
    %252 = vmatpush1.msra.mxu0 %v191
    %253 = vmatprep.subr.mxu0 0.0
    %254 = vmatpush1.msra.mxu0 %v192
    %255 = vmatprep.subr.mxu0 0.0
    %256 = vmatpush1.msra.mxu0 %v193
    %257 = vmatprep.subr.mxu0 0.0
    %258 = vmatpush1.msra.mxu0 %v194
    %259 = vmatprep.subr.mxu0 0.0
    %260 = vmatpush1.msra.mxu0 %v195
    %261 = vmatprep.mubr.f32.mxu0 %v163
    %262 = vmatmul.mubr.f32.gmra.mrb[0].mxu0 %v162
    %v263 = vpop.f32.mrb[0].mxu0
    %v264 = vadd.f32 %v196, %v263
    %v265 = vpop.f32.mrb[0].mxu0
    %266 = vdwg.mxu0
    %v267 = vmax.f32 %v264, 0.0
    %v268 = vld [vmem:[#allocation9 + $0x100] sm:$0xff]
    %v269 = vld [vmem:[#allocation9 + $0x108] sm:$0xff]
    %v270 = vld [vmem:[#allocation9 + $0x110] sm:$0xff]
    %v271 = vld [vmem:[#allocation9 + $0x118] sm:$0xff]
    %v272 = vld [vmem:[#allocation9 + $0x120] sm:$0xff]
    %v273 = vld [vmem:[#allocation9 + $0x128] sm:$0xff]
    %v274 = vld [vmem:[#allocation9 + $0x130] sm:$0xff]
    %v275 = vld [vmem:[#allocation9 + $0x138] sm:$0xff]
    %v276 = vld [vmem:[#allocation9 + $0x140] sm:$0xff]
    %v277 = vld [vmem:[#allocation9 + $0x148] sm:$0xff]
    %v278 = vld [vmem:[#allocation9 + $0x150] sm:$0xff]
    %v279 = vld [vmem:[#allocation9 + $0x158] sm:$0xff]
    %v280 = vld [vmem:[#allocation9 + $0x160] sm:$0xff]
    %v281 = vld [vmem:[#allocation9 + $0x168] sm:$0xff]
    %v282 = vld [vmem:[#allocation9 + $0x170] sm:$0xff]
    %v283 = vld [vmem:[#allocation9 + $0x178] sm:$0xff]
    %v284 = vld [vmem:[#allocation10 + $0x2] ss:$0 sm:$0xff]
    %285 = vmatprep.subr.mxu0 0.0
    %286 = vmatpush1.msra.mxu0 %v268
    %287 = vmatprep.subr.mxu0 0.0
    %288 = vmatpush1.msra.mxu0 %v269
    %289 = vmatprep.subr.mxu0 0.0
    %290 = vmatpush1.msra.mxu0 %v270
    %291 = vmatprep.subr.mxu0 0.0
    %292 = vmatpush1.msra.mxu0 %v271
    %293 = vmatprep.subr.mxu0 0.0
    %294 = vmatpush1.msra.mxu0 %v272
    %295 = vmatprep.subr.mxu0 0.0
    %296 = vmatpush1.msra.mxu0 %v273
    %297 = vmatprep.subr.mxu0 0.0
    %298 = vmatpush1.msra.mxu0 %v274
    %299 = vmatprep.subr.mxu0 0.0
    %300 = vmatpush1.msra.mxu0 %v275
    %301 = vmatprep.subr.mxu0 0.0
    %302 = vmatpush1.msra.mxu0 %v276
    %303 = vmatprep.subr.mxu0 0.0
    %304 = vmatpush1.msra.mxu0 %v277
    %305 = vmatprep.subr.mxu0 0.0
    %306 = vmatpush1.msra.mxu0 %v278
    %307 = vmatprep.subr.mxu0 0.0
    %308 = vmatpush1.msra.mxu0 %v279
    %309 = vmatprep.subr.mxu0 0.0
    %310 = vmatpush1.msra.mxu0 %v280
    %311 = vmatprep.subr.mxu0 0.0
    %312 = vmatpush1.msra.mxu0 %v281
    %313 = vmatprep.subr.mxu0 0.0
    %314 = vmatpush1.msra.mxu0 %v282
    %315 = vmatprep.subr.mxu0 0.0
    %316 = vmatpush1.msra.mxu0 %v283
    %317 = vmatprep.subr.mxu0 0.0
    %318 = vmatpush1.msra.mxu0 0.0
    %319 = vmatprep.subr.mxu0 0.0
    %320 = vmatpush1.msra.mxu0 0.0
    %321 = vmatprep.subr.mxu0 0.0
    %322 = vmatpush1.msra.mxu0 0.0
    %323 = vmatprep.subr.mxu0 0.0
    %324 = vmatpush1.msra.mxu0 0.0
    %325 = vmatprep.subr.mxu0 0.0
    %326 = vmatpush1.msra.mxu0 0.0
    %327 = vmatprep.subr.mxu0 0.0
    %328 = vmatpush1.msra.mxu0 0.0
    %329 = vmatprep.subr.mxu0 0.0
    %330 = vmatpush1.msra.mxu0 0.0
    %331 = vmatprep.subr.mxu0 0.0
    %332 = vmatpush1.msra.mxu0 0.0
    %333 = vmatprep.subr.mxu0 0.0
    %334 = vmatpush1.msra.mxu0 0.0
    %335 = vmatprep.subr.mxu0 0.0
    %336 = vmatpush1.msra.mxu0 0.0
    %337 = vmatprep.subr.mxu0 0.0
    %338 = vmatpush1.msra.mxu0 0.0
    %339 = vmatprep.subr.mxu0 0.0
    %340 = vmatpush1.msra.mxu0 0.0
    %341 = vmatprep.subr.mxu0 0.0
    %342 = vmatpush1.msra.mxu0 0.0
    %343 = vmatprep.subr.mxu0 0.0
    %344 = vmatpush1.msra.mxu0 0.0
    %345 = vmatprep.subr.mxu0 0.0
    %346 = vmatpush1.msra.mxu0 0.0
    %347 = vmatprep.subr.mxu0 0.0
    %348 = vmatpush1.msra.mxu0 0.0
    %349 = vmatprep.mubr.f32.mxu0 0.0
    %350 = vmatmul.mubr.f32.gmra.mrb[0].mxu0 %v267
    %v351 = vpop.f32.mrb[0].mxu0
    %v352 = vadd.f32 %v284, %v351
    %v353 = vpop.f32.mrb[0].mxu0
    %354 = vdwg.mxu0
    %v355 = vmax.f32 %v352, 0.0
    %v356 = vld [vmem:[#allocation9 + $0x180] sm:$0xff]
    %v357 = vld [vmem:[#allocation9 + $0x188] sm:$0xff]
    %v358 = vld [vmem:[#allocation9 + $0x190] sm:$0xff]
    %v359 = vld [vmem:[#allocation9 + $0x198] sm:$0xff]
    %v360 = vld [vmem:[#allocation9 + $0x1a0] sm:$0xff]
    %v361 = vld [vmem:[#allocation9 + $0x1a8] sm:$0xff]
    %v362 = vld [vmem:[#allocation9 + $0x1b0] sm:$0xff]
    %v363 = vld [vmem:[#allocation9 + $0x1b8] sm:$0xff]
    %v364 = vld [vmem:[#allocation9 + $0x1c0] sm:$0xff]
    %v365 = vld [vmem:[#allocation9 + $0x1c8] sm:$0xff]
    %v366 = vld [vmem:[#allocation9 + $0x1d0] sm:$0xff]
    %v367 = vld [vmem:[#allocation9 + $0x1d8] sm:$0xff]
    %v368 = vld [vmem:[#allocation9 + $0x1e0] sm:$0xff]
    %v369 = vld [vmem:[#allocation9 + $0x1e8] sm:$0xff]
    %v370 = vld [vmem:[#allocation9 + $0x1f0] sm:$0xff]
    %v371 = vld [vmem:[#allocation9 + $0x1f8] sm:$0xff]
    %v372 = vld [vmem:[#allocation10 + $0x3] ss:$0 sm:$0xff]
    %373 = vmatprep.subr.mxu0 0.0
    %374 = vmatpush1.msra.mxu0 %v356
    %375 = vmatprep.subr.mxu0 0.0
    %376 = vmatpush1.msra.mxu0 %v357
    %377 = vmatprep.subr.mxu0 0.0
    %378 = vmatpush1.msra.mxu0 %v358
    %379 = vmatprep.subr.mxu0 0.0
    %380 = vmatpush1.msra.mxu0 %v359
    %381 = vmatprep.subr.mxu0 0.0
    %382 = vmatpush1.msra.mxu0 %v360
    %383 = vmatprep.subr.mxu0 0.0
    %384 = vmatpush1.msra.mxu0 %v361
    %385 = vmatprep.subr.mxu0 0.0
    %386 = vmatpush1.msra.mxu0 %v362
    %387 = vmatprep.subr.mxu0 0.0
    %388 = vmatpush1.msra.mxu0 %v363
    %389 = vmatprep.subr.mxu0 0.0
    %390 = vmatpush1.msra.mxu0 %v364
    %391 = vmatprep.subr.mxu0 0.0
    %392 = vmatpush1.msra.mxu0 %v365
    %393 = vmatprep.subr.mxu0 0.0
    %394 = vmatpush1.msra.mxu0 %v366
    %395 = vmatprep.subr.mxu0 0.0
    %396 = vmatpush1.msra.mxu0 %v367
    %397 = vmatprep.subr.mxu0 0.0
    %398 = vmatpush1.msra.mxu0 %v368
    %399 = vmatprep.subr.mxu0 0.0
    %400 = vmatpush1.msra.mxu0 %v369
    %401 = vmatprep.subr.mxu0 0.0
    %402 = vmatpush1.msra.mxu0 %v370
    %403 = vmatprep.subr.mxu0 0.0
    %404 = vmatpush1.msra.mxu0 %v371
    %405 = vmatprep.subr.mxu0 0.0
    %406 = vmatpush1.msra.mxu0 0.0
    %407 = vmatprep.subr.mxu0 0.0
    %408 = vmatpush1.msra.mxu0 0.0
    %409 = vmatprep.subr.mxu0 0.0
    %410 = vmatpush1.msra.mxu0 0.0
    %411 = vmatprep.subr.mxu0 0.0
    %412 = vmatpush1.msra.mxu0 0.0
    %413 = vmatprep.subr.mxu0 0.0
    %414 = vmatpush1.msra.mxu0 0.0
    %415 = vmatprep.subr.mxu0 0.0
    %416 = vmatpush1.msra.mxu0 0.0
    %417 = vmatprep.subr.mxu0 0.0
    %418 = vmatpush1.msra.mxu0 0.0
    %419 = vmatprep.subr.mxu0 0.0
    %420 = vmatpush1.msra.mxu0 0.0
    %421 = vmatprep.subr.mxu0 0.0
    %422 = vmatpush1.msra.mxu0 0.0
    %423 = vmatprep.subr.mxu0 0.0
    %424 = vmatpush1.msra.mxu0 0.0
    %425 = vmatprep.subr.mxu0 0.0
    %426 = vmatpush1.msra.mxu0 0.0
    %427 = vmatprep.subr.mxu0 0.0
    %428 = vmatpush1.msra.mxu0 0.0
    %429 = vmatprep.subr.mxu0 0.0
    %430 = vmatpush1.msra.mxu0 0.0
    %431 = vmatprep.subr.mxu0 0.0
    %432 = vmatpush1.msra.mxu0 0.0
    %433 = vmatprep.subr.mxu0 0.0
    %434 = vmatpush1.msra.mxu0 0.0
    %435 = vmatprep.subr.mxu0 0.0
    %436 = vmatpush1.msra.mxu0 0.0
    %437 = vmatprep.mubr.f32.mxu0 0.0
    %438 = vmatmul.mubr.f32.gmra.mrb[0].mxu0 %v355
    %v439 = vpop.f32.mrb[0].mxu0
    %v440 = vadd.f32 %v372, %v439
    %v441 = vpop.f32.mrb[0].mxu0
    %442 = vdwg.mxu0
    %v443 = vmax.f32 %v440, 0.0
    %v444 = vlaneseq
    %v445 = vshrl.u32 %v444, 7
    %s446 = smul.u32 0, 8
    %v447 = vstv %s446
    %v448 = vadd.s32 %v445, %v447
    %v449 = vlaneseq
    %v450 = vand.u32 %v449, 127
    %s451 = sld [smem:[#allocation3]]
    %v452 = vstv %s451
    %vm453 = vcmp.lt.s32.totalorder %v448, %v452
    %vm454 = vcmp.lt.s32.totalorder %v450, 4
    %vm455 = vmand %vm453, %vm454
    %v456 = vsel %vm455, %v443, 0.0
    %457 = vadd.xlane.f32.xlu0 %v456
    %v458 = vpop.xlane.xlu0 %457
    %v459 = vrot.slane %v458, 4
    %v460 = vadd.f32 %v458, %v459
    %v461 = vrot.slane %v460, 2
    %v462 = vadd.f32 %v460, %v461
    %v463 = vrot.slane %v462, 1
    %v464 = vadd.f32 %v462, %v463
    %s465 = vtos %v464
    %467 = vset.pattern.permute.xlu0 4
    %468 = vperm.xlu0 %467, %v443
    %v469 = vpop.permute.xlu0 %468
    %v471 = vadd.f32 %v443, %v469
    %472 = vst [vmem:[#allocation12] sm:$0xff] %v471
    %vm473 = vcmp.eq.s32.totalorder %v445, 0
    %vm474 = vcmp.eq.s32.totalorder %v450, 0
    %vm475 = vmand %vm473, %vm474
    %v476 = vstv %s465
    %v477 = vsel %vm475, %v476, 0.0
    %478 = vst [vmem:[#allocation13] sm:$0xff] %v477
    // Predicated region
    $region34: #{tpu_custom_call.1} parent=1 // pred_check
      _
    $region35: #{tpu_custom_call.1} parent=1 // pred_check_branch
      %480 = sbr.rel (0) target = $region37
    $region36: #{tpu_custom_call.1} parent=1 // pred_region
      %s482 = ssub.s32 128, 128
      %483 = vsyncadd [#allocation6], %s482
      %s485 = sshll.u32 [#allocation12], 4
      %s486 = int_to_ptr.vmem [resolvable:$true] %s485
      %488 = dma.vmem_to_hbm [thread:$0]  %s486, 128, %s5, [#allocation6]
    $region37: #{tpu_custom_call.1} parent=1 // pred_fallthru
      _
    // Predicated region
    $region38: #{tpu_custom_call.1} parent=1 // pred_check
      _
    $region39: #{tpu_custom_call.1} parent=1 // pred_check_branch
      %490 = sbr.rel (0) target = $region41
    $region40: #{tpu_custom_call.1} parent=1 // pred_region
      %s492 = ssub.s32 128, 128
      %493 = vsyncadd [#allocation14], %s492
      %s495 = sshll.u32 [#allocation13], 4
      %s496 = int_to_ptr.vmem [resolvable:$true] %s495
      %498 = dma.vmem_to_hbm [thread:$0]  %s496, 128, %s6, [#allocation14]
    $region41: #{tpu_custom_call.1} parent=1 // pred_fallthru
      _
    // Predicated region
    $region42: #{tpu_custom_call.1} parent=1 // pred_check
      _
    $region43: #{tpu_custom_call.1} parent=1 // pred_check_branch
      %500 = sbr.rel (0) target = $region45
    $region44: #{tpu_custom_call.1} parent=1 // pred_region
      %501 = dma.done [#allocation6], 128
    $region45: #{tpu_custom_call.1} parent=1 // pred_fallthru
      _
    // Predicated region
    $region46: #{tpu_custom_call.1} parent=1 // pred_check
      _
    $region47: #{tpu_custom_call.1} parent=1 // pred_check_branch
      %503 = sbr.rel (0) target = $region49
    $region48: #{tpu_custom_call.1} parent=1 // pred_region
      %504 = dma.done [#allocation14], 128
    $region49: #{tpu_custom_call.1} parent=1 // pred_fallthru
      _
    %505 = vsyncpa [#allocation5], 1
    %506 = vsyncpa [#allocation8], 1
    %507 = vsyncpa [#allocation11], 1
    %508 = vsyncpa [#allocation6], 1
    %509 = vsyncpa [#allocation14], 1

</llo_original>
